<compile_context>
chip_gen: v6e
topology: v6e:2x2x1
jax: 0.10.0
libtpu: 0.0.40
codegen_flags: <defaults>
</compile_context>

<pallas_src>
import jax
import jax.numpy as jnp
from jax.experimental import pallas as pl
from jax.experimental.pallas import tpu as pltpu

_LANES = 128                     # last dim must map densely onto the 128 lanes
_SUBLANES = 8                    # second-minor dim multiple-of-8 requirement
_TARGET_BLOCK_BYTES = 1 << 20    # ~1 MiB per block -> ~4 MiB live (dbl-buffered in+out)


def _tact_kernel(coef_ref, x_ref, o_ref):
    # coef_ref (SMEM, float32): [A, B, C] precomputed from (alpha, beta).
    A = coef_ref[0]
    B = coef_ref[1]
    C = coef_ref[2]
    x = x_ref[...].astype(jnp.float32)   # keep math in f32 even for bf16 I/O
    y = (A * x + B) * (jnp.tanh(C * x) + 1.0)
    o_ref[...] = y.astype(o_ref.dtype)


def tact_forward(x, alpha, beta):
    """Applies tact(x) = (0.5*alpha*x + (0.5 - 0.5*alpha)) * (tanh(0.5*(1+beta)*x) + 1)."""
    orig_shape = x.shape
    total = x.size
    dtype = x.dtype

    # Precompute the three coefficients once, in float32 (never quantized to x.dtype).
    alpha32 = jnp.asarray(alpha, jnp.float32)
    beta32 = jnp.asarray(beta, jnp.float32)
    A = 0.5 * alpha32
    B = 0.5 - A
    C = 0.5 * (1.0 + beta32)
    coefs = jnp.stack([A, B, C])

    # Lane-dense slab: (rows, 128), rows padded up to a multiple of the row tile.
    itemsize = jnp.dtype(dtype).itemsize
    rows_needed = -(-total // _LANES)
    max_rows = max(_SUBLANES, _TARGET_BLOCK_BYTES // (_LANES * itemsize))
    tile_r = min(max_rows, rows_needed)
    tile_r = max(_SUBLANES, (tile_r // _SUBLANES) * _SUBLANES)
    rows = -(-rows_needed // tile_r) * tile_r
    grid_r = rows // tile_r

    flat = x.reshape(-1)
    pad = rows * _LANES - total
    if pad:
        flat = jnp.pad(flat, (0, pad))
    x2d = flat.reshape(rows, _LANES)

    out2d = pl.pallas_call(
        _tact_kernel,
        out_shape=jax.ShapeDtypeStruct((rows, _LANES), dtype),
        grid_spec=pltpu.PrefetchScalarGridSpec(
            num_scalar_prefetch=1,
            grid=(grid_r,),
            in_specs=[pl.BlockSpec((tile_r, _LANES), lambda i, coef: (i, 0))],
            out_specs=pl.BlockSpec((tile_r, _LANES), lambda i, coef: (i, 0)),
        ),
        compiler_params=pltpu.CompilerParams(
            # Row tiles are independent -> shard across v7x's two TensorCores;
            # neutral on single-TC v5e/v6e.
            dimension_semantics=("parallel",),
        ),
    )(coefs, x2d)

    out_flat = out2d.reshape(-1)
    if pad:
        out_flat = out_flat[:total]
    return out_flat.reshape(orig_shape)


def tact_reference(x, alpha, beta):
    A = 0.5 * alpha
    B = 0.5 - A
    C = 0.5 * (1.0 + beta)
    return (A * x + B) * (jnp.tanh(C * x) + 1.0)


if __name__ == "__main__":
    key = jax.random.PRNGKey(0)
    # Small shape consistent with the module's "(N, *)" contract (CIFAR-like NCHW).
    x = jax.random.normal(key, (2, 4, 16, 16), dtype=jnp.float32)

    # Deterministic parameter values (module draws from U(0, 0.5); we fix them).
    alpha = 0.25
    beta = 0.25

    out = tact_forward(x, alpha, beta)
    out = jax.block_until_ready(out)

    ref = tact_reference(x, alpha, beta)
    assert out.shape == x.shape
    assert jnp.allclose(out, ref, atol=1e-5, rtol=1e-5), "mismatch vs reference"

    print("KERNEL_OK")
</pallas_src>

<mosaic_0001>
module attributes {stable_mosaic.version = 11 : i64} {
  func.func @_tact_kernel(%arg0: i32, %arg1: memref<3xf32, #tpu.memory_space<smem>>, %arg2: memref<16x128xf32, #tpu.memory_space<vmem>>, %arg3: memref<16x128xf32, #tpu.memory_space<vmem>>) attributes {dimension_semantics = [#tpu.dimension_semantics<parallel>], iteration_bounds = array<i64: 1>, scalar_prefetch = 1 : i64, scratch_operands = 0 : i64, tpu.core_type = #tpu.core_type<tc>, window_params = [{transform_indices = @transform_0, window_bounds = array<i64: 16, 128>}, {transform_indices = @transform_1, window_bounds = array<i64: 16, 128>}]} {
    %c0 = arith.constant 0 : index
    %0 = memref.load %arg1[%c0] : memref<3xf32, #tpu.memory_space<smem>>
    %c1 = arith.constant 1 : index
    %1 = memref.load %arg1[%c1] : memref<3xf32, #tpu.memory_space<smem>>
    %c2 = arith.constant 2 : index
    %2 = memref.load %arg1[%c2] : memref<3xf32, #tpu.memory_space<smem>>
    %c0_0 = arith.constant 0 : index
    %c0_1 = arith.constant 0 : index
    %3 = vector.load %arg2[%c0_0, %c0_1] : memref<16x128xf32, #tpu.memory_space<vmem>>, vector<16x128xf32>
    %4 = vector.broadcast %0 : f32 to vector<16x128xf32>
    %5 = arith.mulf %4, %3 : vector<16x128xf32>
    %6 = vector.broadcast %1 : f32 to vector<16x128xf32>
    %7 = arith.addf %5, %6 : vector<16x128xf32>
    %8 = vector.broadcast %2 : f32 to vector<16x128xf32>
    %9 = arith.mulf %8, %3 : vector<16x128xf32>
    %10 = math.tanh %9 : vector<16x128xf32>
    %cst = arith.constant 1.000000e+00 : f32
    %11 = vector.broadcast %cst : f32 to vector<16x128xf32>
    %12 = arith.addf %10, %11 : vector<16x128xf32>
    %13 = arith.mulf %7, %12 : vector<16x128xf32>
    %c0_2 = arith.constant 0 : index
    %c0_3 = arith.constant 0 : index
    %14 = vector.load %arg3[%c0_2, %c0_3] : memref<16x128xf32, #tpu.memory_space<vmem>>, vector<16x128xf32>
    tpu.vector_store %arg3[%c0_2, %c0_3], %13 {strides = array<i32>} : memref<16x128xf32, #tpu.memory_space<vmem>>, vector<16x128xf32>,
    return
  }
  func.func @transform_0(%arg0: i32, %arg1: memref<3xf32, #tpu.memory_space<smem>>) -> (i32, i32) {
    %c0_i32 = arith.constant 0 : i32
    %c0_i32_0 = arith.constant 0 : i32
    return %arg0, %c0_i32 : i32, i32
  }
  func.func @transform_1(%arg0: i32, %arg1: memref<3xf32, #tpu.memory_space<smem>>) -> (i32, i32) {
    %c0_i32 = arith.constant 0 : i32
    %c0_i32_0 = arith.constant 0 : i32
    return %arg0, %c0_i32 : i32, i32
  }
}

</mosaic_0001>

<llo_original>
// kernel: tpu_custom_call.1
$region0: #{tpu_custom_call.1}
  #allocation0 [shape = 'u32[]', space=smem, size = 0x4, offset = 0x4, fixed_abs, tag = 'smem constant byte address 0x4 - core index']
  #allocation1 [shape = 'u32[144,128]{1,0:T(1,128)}', space=vmem, size = 0x12000, scoped, tag = 'internal scratch']
  #allocation2 [shape = 's32[1]{0}', space=sflag, size = 0x4, scoped, tag = 'scoped memory for tpu_custom_call.1']
  #allocation3 [shape = 'u8[512]{0}', space=smem, size = 0x200, scoped, tag = 'prefetched SMEM operand 0']
  %s0 = inlined_call_operand.hbm [shape: f32[3], index: 0, kind: input, shape index: {}]
  %s1 = inlined_call_operand.hbm [shape: f32[16,128], index: 1, kind: input, shape index: {}]
  %s2 = inlined_call_operand.hbm [shape: f32[16,128], index: 2, kind: output, shape index: {}]
  %s3 = sld [smem:[#allocation0]]
  $region18: #{tpu_custom_call.1} parent=0
    _
  %s5 = ssub.s32 1, %s3
  %s6 = scalar_select 0, %s5, %s3
  %8 = dma.hbm_to_smem %s0, 16, [#allocation3], [#allocation2]
  %9 = dma.done [#allocation2], 16
  %10 = sfence
  $region1: #{tpu_custom_call.1} parent=0
    #allocation4 [shape = 'u8[8192]{0}', space=vmem, size = 0x2000, scoped, tag = 'input window, operand 1, single buffered']
    #allocation5 [shape = 's32[1]{0}', space=sflag, size = 0x4, scoped, tag = 'scoped memory for tpu_custom_call.1']
    #allocation6 [shape = 's32[1]{0}', space=sflag, size = 0x4, scoped, tag = 'scoped memory for tpu_custom_call.1']
    #allocation7 [shape = 'u8[8192]{0}', space=vmem, size = 0x2000, scoped, tag = 'output window, operand 0, single buffered']
    %11 = vsyncpa [#allocation5], 0
    %12 = vsyncpa [#allocation6], 0
    // Predicated region
    $region2: #{tpu_custom_call.1} parent=1 // pred_check
      _
    $region3: #{tpu_custom_call.1} parent=1 // pred_check_branch
      %14 = sbr.rel (0) target = $region5
    $region4: #{tpu_custom_call.1} parent=1 // pred_region
      %s16 = ssub.s32 256, 256
      %17 = vsyncadd [#allocation5], %s16
      %s18 = sshll.u32 [#allocation4], 4
      %s19 = int_to_ptr.vmem [resolvable:$true] %s18
      %24 = dma.hbm_to_vmem [thread:$0]  %s1, 256, %s19, [#allocation5], 128, 128, 8
    $region5: #{tpu_custom_call.1} parent=1 // pred_fallthru
      _
    // Predicated region
    $region6: #{tpu_custom_call.1} parent=1 // pred_check
      _
    $region7: #{tpu_custom_call.1} parent=1 // pred_check_branch
      %26 = sbr.rel (0) target = $region9
    $region8: #{tpu_custom_call.1} parent=1 // pred_region
      %27 = dma.done [#allocation5], 256
    $region9: #{tpu_custom_call.1} parent=1 // pred_fallthru
      _
    %s28 = sld [smem:[#allocation3]]
    %s29 = sld [smem:[#allocation3 + $0x1]]
    %s30 = sld [smem:[#allocation3 + $0x2]]
    %v31 = vld [vmem:[#allocation4] sm:$0xff]
    %v32 = vld [vmem:[#allocation4 + $0x8] sm:$0xff]
    %v33 = vstv %s28
    %v34 = vmul.f32 %v33, %v31
    %v35 = vmul.f32 %v33, %v32
    %v36 = vstv %s29
    %v37 = vadd.f32 %v34, %v36
    %v38 = vadd.f32 %v35, %v36
    %v39 = vstv %s30
    %v40 = vmul.f32 %v39, %v31
    %v41 = vmul.f32 %v39, %v32
    %v42 = vtanh.pop %v40
    %v43 = vtanh.pop %v41
    %v44 = vadd.f32 %v42, 1.0
    %v45 = vadd.f32 %v43, 1.0
    %v46 = vmul.f32 %v37, %v44
    %v47 = vmul.f32 %v38, %v45
    %48 = vst [vmem:[#allocation7] sm:$0xff] %v46
    %49 = vst [vmem:[#allocation7 + $0x8] sm:$0xff] %v47
    // Predicated region
    $region10: #{tpu_custom_call.1} parent=1 // pred_check
      _
    $region11: #{tpu_custom_call.1} parent=1 // pred_check_branch
      %51 = sbr.rel (0) target = $region13
    $region12: #{tpu_custom_call.1} parent=1 // pred_region
      %s53 = ssub.s32 256, 256
      %54 = vsyncadd [#allocation6], %s53
      %s55 = sshll.u32 [#allocation7], 4
      %s56 = int_to_ptr.vmem [resolvable:$true] %s55
      %61 = dma.vmem_to_hbm [thread:$0]  %s56, 256, %s2, [#allocation6], 128, 128, 8
    $region13: #{tpu_custom_call.1} parent=1 // pred_fallthru
      _
    // Predicated region
    $region14: #{tpu_custom_call.1} parent=1 // pred_check
      _
    $region15: #{tpu_custom_call.1} parent=1 // pred_check_branch
      %63 = sbr.rel (0) target = $region17
    $region16: #{tpu_custom_call.1} parent=1 // pred_region
      %64 = dma.done [#allocation6], 256
    $region17: #{tpu_custom_call.1} parent=1 // pred_fallthru
      _
    %65 = vsyncpa [#allocation5], 1
    %66 = vsyncpa [#allocation6], 1

</llo_original>
